<compile_context>
chip_gen: v5e
topology: v5e:2x2
jax: 0.10.0
libtpu: 0.0.40
codegen_flags: <defaults>
</compile_context>

<pallas_src>
import functools

import jax
import jax.numpy as jnp
from jax.experimental import pallas as pl
from jax.experimental.pallas import tpu as pltpu


def _round_up(x, m):
    return (x + m - 1) // m * m


def vae_q_kernel(state_ref, eps_ref,
                 w1_ref, b1_ref,        # encoder.hqz : Linear(S -> F1) + ReLU
                 wms_ref, bms_ref,      # fused lane-aligned [muq | sigmaq] : (F1, 2*ZP)
                 wrp_ref, brp_ref,      # fused lane-aligned [py[0] | reconstruct] : (ZP, ZP+OUT)
                 wp2_ref, bp2_ref,      # decoder.py[2] pre-placed : (ZP, OUT)
                 out_ref,               # packed (tb, OUT): [ z | px | py | 0-pad ]
                 *, z_units, zp, out_pad):
    x = state_ref[...]

    # ---------------- encoder ----------------
    h = jnp.maximum(
        jnp.dot(x, w1_ref[...], preferred_element_type=jnp.float32) + b1_ref[...],
        0.0)                                                            # (tb, F1) f32
    h = h.astype(wms_ref.dtype)                                         # narrow operand for bf16 path

    # fused mu / sigma pre-activation; both slices are 128-lane aligned.
    ms = jnp.dot(h, wms_ref[...], preferred_element_type=jnp.float32) + bms_ref[...]
    mu = ms[:, :zp]                                                     # mu in lanes [0, Z), 0 elsewhere
    sig_pre = ms[:, zp:]
    # numerically stable softplus (matches F.softplus / jax.nn.softplus)
    sig = jnp.maximum(sig_pre, 0.0) + jnp.log1p(jnp.exp(-jnp.abs(sig_pre)))

    # reparameterize_normal: eps is pre-sampled (B, Z) in HBM; widen to ZP lanes
    # in-register with an aligned zero concat (keeps HBM traffic at B*Z).
    eps = eps_ref[...].astype(jnp.float32)                              # (tb, Z)
    if zp > z_units:
        eps = jnp.concatenate(
            [eps, jnp.zeros((eps.shape[0], zp - z_units), jnp.float32)], axis=1)
    z = mu + eps * sig                                                  # (tb, ZP); exact 0 in pad lanes

    # ---------------- decoder ----------------
    zc = z.astype(wrp_ref.dtype)
    rp = jnp.dot(zc, wrp_ref[...], preferred_element_type=jnp.float32) + brp_ref[...]
    hp = jnp.maximum(rp[:, :zp], 0.0)                                   # py[0] + ReLU, lanes [0, Z)
    px_slab = rp[:, zp:]                                                # px already at lanes [Z, Z+S)

    py_slab = (jnp.dot(hp.astype(wp2_ref.dtype), wp2_ref[...],
                       preferred_element_type=jnp.float32) + bp2_ref[...])
    # py already at lanes [Z+S, Z+S+A); every other lane of py_slab is exactly 0.

    # -------- packed, lane-dense output: pure adds, no lane movement ----------
    if zp < out_pad:  # only when round_up(Z,128) < round_up(Z+S+A,128)
        z = jnp.concatenate(
            [z, jnp.zeros((z.shape[0], out_pad - zp), jnp.float32)], axis=1)
    out_ref[...] = (z + px_slab + py_slab).astype(out_ref.dtype)


def prepare_fused_params(params, *, io_dtype=jnp.float32):
    """Fuse / zero-pad / lane-place the weights ONCE (call at init, not per step)."""
    S, F1 = params["w1"].shape
    Z = params["wmu"].shape[1]
    A = params["wp2"].shape[1]
    ZP = _round_up(Z, 128)
    OUT = max(128, _round_up(Z + S + A, 128))
    f32 = jnp.float32

    # [mu | sigma], each in its own 128-lane-aligned group (mu has no bias).
    wms = jnp.zeros((F1, 2 * ZP), f32)
    wms = wms.at[:, :Z].set(params["wmu"]).at[:, ZP:ZP + Z].set(params["wsig"])
    bms = jnp.zeros((1, 2 * ZP), f32).at[:, ZP:ZP + Z].set(params["bsig"])

    # [py[0] hidden | reconstruction], reconstruction pre-placed at output lanes [Z, Z+S).
    wrp = jnp.zeros((ZP, ZP + OUT), f32)
    wrp = wrp.at[:Z, :Z].set(params["wp1"])
    wrp = wrp.at[:Z, ZP + Z:ZP + Z + S].set(params["wrec"])
    brp = jnp.zeros((1, ZP + OUT), f32)
    brp = brp.at[:, :Z].set(params["bp1"]).at[:, ZP + Z:ZP + Z + S].set(params["brec"])

    # py[2] pre-placed at output lanes [Z+S, Z+S+A).
    wp2 = jnp.zeros((ZP, OUT), f32).at[:Z, Z + S:Z + S + A].set(params["wp2"])
    bp2 = jnp.zeros((1, OUT), f32).at[:, Z + S:Z + S + A].set(params["bp2"])

    fused = dict(w1=params["w1"], b1=params["b1"], wms=wms, bms=bms,
                 wrp=wrp, brp=brp, wp2=wp2, bp2=bp2)
    fused = {k: v.astype(io_dtype) for k, v in fused.items()}
    meta = dict(state_size=S, action_size=A, z_units=Z, zp=ZP, out_pad=OUT,
                io_dtype=io_dtype)
    return fused, meta


def _default_tile_b(B):
    if B <= 64:
        return B                       # tiny batch: one grid step (latency path)
    # >= 2 "parallel" grid steps so both v7x TensorCores get work; tiles up to
    # 2048 rows amortize the ~0.35us per-grid-step overhead on all generations.
    for cand in (2048, 1024, 512, 256, 128, 64, 32, 16, 8):
        if cand < B and B % cand == 0:
            return cand
    return B  # TODO(synk): pad/mask ragged batches instead of one big tile.


def vae_qnetwork_forward(state, eps, fused, meta, *, tile_b=None):
    """Full VAE_QNetwork forward pass in one pallas_call.

    state: (B, S); eps: (B, Z) pre-sampled standard normal.
    Returns dict {'z': (B, Z), 'py': (B, A), 'px': (B, S)}.
    """
    B, S = state.shape
    Z, A = meta["z_units"], meta["action_size"]
    ZP, OUT = meta["zp"], meta["out_pad"]
    io_dtype = meta["io_dtype"]

    if tile_b is None:
        tile_b = _default_tile_b(B)
    assert B % tile_b == 0, "batch must be a multiple of tile_b"

    state = state.astype(io_dtype)
    eps = eps.astype(io_dtype)

    weight_args = [fused["w1"], fused["b1"], fused["wms"], fused["bms"],
                   fused["wrp"], fused["brp"], fused["wp2"], fused["bp2"]]

    full = lambda arr: pl.BlockSpec(arr.shape, lambda i: (0, 0))
    batched = lambda feat: pl.BlockSpec((tile_b, feat), lambda i: (i, 0))

    kernel = functools.partial(vae_q_kernel, z_units=Z, zp=ZP, out_pad=OUT)

    packed = pl.pallas_call(
        kernel,
        out_shape=jax.ShapeDtypeStruct((B, OUT), io_dtype),
        grid_spec=pl.GridSpec(
            grid=(B // tile_b,),
            in_specs=[batched(S), batched(Z)] + [full(w) for w in weight_args],
            out_specs=pl.BlockSpec((tile_b, OUT), lambda i: (i, 0)),
        ),
        compiler_params=pltpu.CompilerParams(
            dimension_semantics=("parallel",)),
    )(state, eps, *weight_args)

    z = packed[:, :Z]
    px = packed[:, Z:Z + S]
    py = packed[:, Z + S:Z + S + A]
    return {"z": z, "py": py, "px": px}


def init_params(key, state_size, action_size, fc1_units=64, z_units=64):
    """Deterministic PyTorch-style (uniform +-1/sqrt(fan_in)) init.

    Weights are stored [in, out] (transposed vs. torch) for x @ W.
    """
    keys = jax.random.split(key, 16)
    kiter = iter(keys)

    def linear(in_f, out_f, bias=True):
        bound = 1.0 / (in_f ** 0.5)
        w = jax.random.uniform(next(kiter), (in_f, out_f), jnp.float32, -bound, bound)
        if not bias:
            return w, None
        b = jax.random.uniform(next(kiter), (1, out_f), jnp.float32, -bound, bound)
        return w, b

    w1, b1 = linear(state_size, fc1_units)           # encoder.hqz
    wmu, _ = linear(fc1_units, z_units, bias=False)  # encoder.muq (no bias)
    wsig, bsig = linear(fc1_units, z_units)          # encoder.sigmaq
    wrec, brec = linear(z_units, state_size)         # decoder.reoconstruct
    wp1, bp1 = linear(z_units, z_units)              # decoder.py[0]
    wp2, bp2 = linear(z_units, action_size)          # decoder.py[2]

    return dict(w1=w1, b1=b1, wmu=wmu, wsig=wsig, bsig=bsig,
                wrec=wrec, brec=brec, wp1=wp1, bp1=bp1, wp2=wp2, bp2=bp2)


def reference_forward(state, eps, p):
    """Pure-JAX reference (mirrors the PyTorch module) for correctness check."""
    h = jnp.maximum(state @ p["w1"] + p["b1"], 0.0)
    mu = h @ p["wmu"]
    sig = jax.nn.softplus(h @ p["wsig"] + p["bsig"])
    z = mu + eps * sig
    px = z @ p["wrec"] + p["brec"]
    hp = jnp.maximum(z @ p["wp1"] + p["bp1"], 0.0)
    py = hp @ p["wp2"] + p["bp2"]
    return {"z": z, "py": py, "px": px}


if __name__ == "__main__":
    # Small, forward-consistent shapes.
    B, state_size, action_size = 16, 16, 4
    fc1_units = z_units = 64

    key = jax.random.PRNGKey(0)
    k_params, k_state, k_eps = jax.random.split(key, 3)

    params = init_params(k_params, state_size, action_size, fc1_units, z_units)
    # Weight fusion / lane placement hoisted out of the per-call path (done once).
    # For v6e/v7x large-batch throughput, pass io_dtype=jnp.bfloat16 here.
    fused, meta = prepare_fused_params(params, io_dtype=jnp.float32)

    state = jax.random.normal(k_state, (B, state_size), jnp.float32)
    # eps ~ N(0, 1), sampled in glue (reparameterization noise, mirrors randn_like).
    # TODO(synk): for large batches generate eps in-kernel (pltpu.prng_seed +
    # pltpu.stateful_normal) to drop ~30% of HBM traffic; kept host-sampled here
    # so outputs stay bit-comparable to the jax.random-based reference.
    eps = jax.random.normal(k_eps, (B, z_units), jnp.float32)

    out = vae_qnetwork_forward(state, eps, fused, meta)
    jax.block_until_ready(out)

    ref = reference_forward(state, eps, params)
    for name in ("z", "py", "px"):
        assert jnp.allclose(out[name], ref[name], atol=1e-5, rtol=1e-5), name

    print("KERNEL_OK")
</pallas_src>

<mosaic_0001>
module attributes {stable_mosaic.version = 11 : i64} {
  func.func @vae_q_kernel(%arg0: i32, %arg1: memref<16x16xf32, #tpu.memory_space<vmem>>, %arg2: memref<16x64xf32, #tpu.memory_space<vmem>>, %arg3: memref<16x64xf32, #tpu.memory_space<vmem>>, %arg4: memref<1x64xf32, #tpu.memory_space<vmem>>, %arg5: memref<64x256xf32, #tpu.memory_space<vmem>>, %arg6: memref<1x256xf32, #tpu.memory_space<vmem>>, %arg7: memref<128x256xf32, #tpu.memory_space<vmem>>, %arg8: memref<1x256xf32, #tpu.memory_space<vmem>>, %arg9: memref<128x128xf32, #tpu.memory_space<vmem>>, %arg10: memref<1x128xf32, #tpu.memory_space<vmem>>, %arg11: memref<16x128xf32, #tpu.memory_space<vmem>>) attributes {dimension_semantics = [#tpu.dimension_semantics<parallel>], iteration_bounds = array<i64: 1>, scalar_prefetch = 0 : i64, scratch_operands = 0 : i64, tpu.core_type = #tpu.core_type<tc>, window_params = [{transform_indices = @transform_0, window_bounds = array<i64: 16, 16>}, {transform_indices = @transform_1, window_bounds = array<i64: 16, 64>}, {pipeline_mode = #tpu.pipeline_mode<synchronous>, transform_indices = @transform_2, window_bounds = array<i64: 16, 64>}, {pipeline_mode = #tpu.pipeline_mode<synchronous>, transform_indices = @transform_3, window_bounds = array<i64: 1, 64>}, {pipeline_mode = #tpu.pipeline_mode<synchronous>, transform_indices = @transform_4, window_bounds = array<i64: 64, 256>}, {pipeline_mode = #tpu.pipeline_mode<synchronous>, transform_indices = @transform_5, window_bounds = array<i64: 1, 256>}, {pipeline_mode = #tpu.pipeline_mode<synchronous>, transform_indices = @transform_6, window_bounds = array<i64: 128, 256>}, {pipeline_mode = #tpu.pipeline_mode<synchronous>, transform_indices = @transform_7, window_bounds = array<i64: 1, 256>}, {pipeline_mode = #tpu.pipeline_mode<synchronous>, transform_indices = @transform_8, window_bounds = array<i64: 128, 128>}, {pipeline_mode = #tpu.pipeline_mode<synchronous>, transform_indices = @transform_9, window_bounds = array<i64: 1, 128>}, {transform_indices = @transform_10, window_bounds = array<i64: 16, 128>}]} {
    %c0 = arith.constant 0 : index
    %c0_0 = arith.constant 0 : index
    %0 = vector.load %arg1[%c0, %c0_0] : memref<16x16xf32, #tpu.memory_space<vmem>>, vector<16x16xf32>
    %c0_1 = arith.constant 0 : index
    %c0_2 = arith.constant 0 : index
    %1 = vector.load %arg3[%c0_1, %c0_2] : memref<16x64xf32, #tpu.memory_space<vmem>>, vector<16x64xf32>
    %cst = arith.constant dense<0.000000e+00> : vector<16x64xf32>
    %2 = tpu.matmul %0, %1, %cst {dimension_numbers = #tpu.dot_dimension_numbers<[1], [0], [0], [1], [0, 0, 1, 1], [], []>} : vector<16x16xf32>, vector<16x64xf32>, vector<16x64xf32> -> vector<16x64xf32>
    %c0_3 = arith.constant 0 : index
    %c0_4 = arith.constant 0 : index
    %3 = vector.load %arg4[%c0_3, %c0_4] : memref<1x64xf32, #tpu.memory_space<vmem>>, vector<1x64xf32>
    %4 = vector.broadcast %3 : vector<1x64xf32> to vector<16x64xf32>
    %5 = arith.addf %2, %4 : vector<16x64xf32>
    %cst_5 = arith.constant 0.000000e+00 : f32
    %6 = vector.broadcast %cst_5 : f32 to vector<16x64xf32>
    %7 = arith.maximumf %5, %6 : vector<16x64xf32>
    %c0_6 = arith.constant 0 : index
    %c0_7 = arith.constant 0 : index
    %8 = vector.load %arg5[%c0_6, %c0_7] : memref<64x256xf32, #tpu.memory_space<vmem>>, vector<64x256xf32>
    %cst_8 = arith.constant dense<0.000000e+00> : vector<16x256xf32>
    %9 = tpu.matmul %7, %8, %cst_8 {dimension_numbers = #tpu.dot_dimension_numbers<[1], [0], [0], [1], [0, 0, 1, 1], [], []>} : vector<16x64xf32>, vector<64x256xf32>, vector<16x256xf32> -> vector<16x256xf32>
    %c0_9 = arith.constant 0 : index
    %c0_10 = arith.constant 0 : index
    %10 = vector.load %arg6[%c0_9, %c0_10] : memref<1x256xf32, #tpu.memory_space<vmem>>, vector<1x256xf32>
    %11 = vector.broadcast %10 : vector<1x256xf32> to vector<16x256xf32>
    %12 = arith.addf %9, %11 : vector<16x256xf32>
    %13 = vector.extract_strided_slice %12 {offsets = [0, 0], sizes = [16, 128], strides = [1, 1]} : vector<16x256xf32> to vector<16x128xf32>
    %14 = vector.extract_strided_slice %12 {offsets = [0, 128], sizes = [16, 128], strides = [1, 1]} : vector<16x256xf32> to vector<16x128xf32>
    %cst_11 = arith.constant 0.000000e+00 : f32
    %15 = vector.broadcast %cst_11 : f32 to vector<16x128xf32>
    %16 = arith.maximumf %14, %15 : vector<16x128xf32>
    %17 = math.absf %14 : vector<16x128xf32>
    %cst_12 = arith.constant 0.000000e+00 : f32
    %18 = vector.broadcast %cst_12 : f32 to vector<16x128xf32>
    %19 = arith.subf %18, %17 : vector<16x128xf32>
    %20 = math.exp %19 : vector<16x128xf32>
    %21 = math.log1p %20 : vector<16x128xf32>
    %22 = arith.addf %16, %21 : vector<16x128xf32>
    %c0_13 = arith.constant 0 : index
    %c0_14 = arith.constant 0 : index
    %23 = vector.load %arg2[%c0_13, %c0_14] : memref<16x64xf32, #tpu.memory_space<vmem>>, vector<16x64xf32>
    %cst_15 = arith.constant 0.000000e+00 : f32
    %24 = vector.broadcast %cst_15 : f32 to vector<16x64xf32>
    %25 = tpu.concatenate %23, %24 in 1 : vector<16x64xf32>, vector<16x64xf32> -> vector<16x128xf32>
    %26 = arith.mulf %25, %22 : vector<16x128xf32>
    %27 = arith.addf %13, %26 : vector<16x128xf32>
    %c0_16 = arith.constant 0 : index
    %c0_17 = arith.constant 0 : index
    %28 = vector.load %arg7[%c0_16, %c0_17] : memref<128x256xf32, #tpu.memory_space<vmem>>, vector<128x256xf32>
    %cst_18 = arith.constant dense<0.000000e+00> : vector<16x256xf32>
    %29 = tpu.matmul %27, %28, %cst_18 {dimension_numbers = #tpu.dot_dimension_numbers<[1], [0], [0], [1], [0, 0, 1, 1], [], []>} : vector<16x128xf32>, vector<128x256xf32>, vector<16x256xf32> -> vector<16x256xf32>
    %c0_19 = arith.constant 0 : index
    %c0_20 = arith.constant 0 : index
    %30 = vector.load %arg8[%c0_19, %c0_20] : memref<1x256xf32, #tpu.memory_space<vmem>>, vector<1x256xf32>
    %31 = vector.broadcast %30 : vector<1x256xf32> to vector<16x256xf32>
    %32 = arith.addf %29, %31 : vector<16x256xf32>
    %33 = vector.extract_strided_slice %32 {offsets = [0, 0], sizes = [16, 128], strides = [1, 1]} : vector<16x256xf32> to vector<16x128xf32>
    %cst_21 = arith.constant 0.000000e+00 : f32
    %34 = vector.broadcast %cst_21 : f32 to vector<16x128xf32>
    %35 = arith.maximumf %33, %34 : vector<16x128xf32>
    %36 = vector.extract_strided_slice %32 {offsets = [0, 128], sizes = [16, 128], strides = [1, 1]} : vector<16x256xf32> to vector<16x128xf32>
    %c0_22 = arith.constant 0 : index
    %c0_23 = arith.constant 0 : index
    %37 = vector.load %arg9[%c0_22, %c0_23] : memref<128x128xf32, #tpu.memory_space<vmem>>, vector<128x128xf32>
    %cst_24 = arith.constant dense<0.000000e+00> : vector<16x128xf32>
    %38 = tpu.matmul %35, %37, %cst_24 {dimension_numbers = #tpu.dot_dimension_numbers<[1], [0], [0], [1], [0, 0, 1, 1], [], []>} : vector<16x128xf32>, vector<128x128xf32>, vector<16x128xf32> -> vector<16x128xf32>
    %c0_25 = arith.constant 0 : index
    %c0_26 = arith.constant 0 : index
    %39 = vector.load %arg10[%c0_25, %c0_26] : memref<1x128xf32, #tpu.memory_space<vmem>>, vector<1x128xf32>
    %40 = vector.broadcast %39 : vector<1x128xf32> to vector<16x128xf32>
    %41 = arith.addf %38, %40 : vector<16x128xf32>
    %42 = arith.addf %27, %36 : vector<16x128xf32>
    %43 = arith.addf %42, %41 : vector<16x128xf32>
    %c0_27 = arith.constant 0 : index
    %c0_28 = arith.constant 0 : index
    %44 = vector.load %arg11[%c0_27, %c0_28] : memref<16x128xf32, #tpu.memory_space<vmem>>, vector<16x128xf32>
    tpu.vector_store %arg11[%c0_27, %c0_28], %43 {strides = array<i32>} : memref<16x128xf32, #tpu.memory_space<vmem>>, vector<16x128xf32>,
    return
  }
  func.func @transform_0(%arg0: i32) -> (i32, i32) {
    %c0_i32 = arith.constant 0 : i32
    %c0_i32_0 = arith.constant 0 : i32
    return %arg0, %c0_i32 : i32, i32
  }
  func.func @transform_1(%arg0: i32) -> (i32, i32) {
    %c0_i32 = arith.constant 0 : i32
    %c0_i32_0 = arith.constant 0 : i32
    return %arg0, %c0_i32 : i32, i32
  }
  func.func @transform_2(%arg0: i32) -> (i32, i32) {
    %c0_i32 = arith.constant 0 : i32
    %c0_i32_0 = arith.constant 0 : i32
    %c0_i32_1 = arith.constant 0 : i32
    return %c0_i32, %c0_i32_0 : i32, i32
  }
  func.func @transform_3(%arg0: i32) -> (i32, i32) {
    %c0_i32 = arith.constant 0 : i32
    %c0_i32_0 = arith.constant 0 : i32
    %c0_i32_1 = arith.constant 0 : i32
    return %c0_i32, %c0_i32_0 : i32, i32
  }
  func.func @transform_4(%arg0: i32) -> (i32, i32) {
    %c0_i32 = arith.constant 0 : i32
    %c0_i32_0 = arith.constant 0 : i32
    %c0_i32_1 = arith.constant 0 : i32
    return %c0_i32, %c0_i32_0 : i32, i32
  }
  func.func @transform_5(%arg0: i32) -> (i32, i32) {
    %c0_i32 = arith.constant 0 : i32
    %c0_i32_0 = arith.constant 0 : i32
    %c0_i32_1 = arith.constant 0 : i32
    return %c0_i32, %c0_i32_0 : i32, i32
  }
  func.func @transform_6(%arg0: i32) -> (i32, i32) {
    %c0_i32 = arith.constant 0 : i32
    %c0_i32_0 = arith.constant 0 : i32
    %c0_i32_1 = arith.constant 0 : i32
    return %c0_i32, %c0_i32_0 : i32, i32
  }
  func.func @transform_7(%arg0: i32) -> (i32, i32) {
    %c0_i32 = arith.constant 0 : i32
    %c0_i32_0 = arith.constant 0 : i32
    %c0_i32_1 = arith.constant 0 : i32
    return %c0_i32, %c0_i32_0 : i32, i32
  }
  func.func @transform_8(%arg0: i32) -> (i32, i32) {
    %c0_i32 = arith.constant 0 : i32
    %c0_i32_0 = arith.constant 0 : i32
    %c0_i32_1 = arith.constant 0 : i32
    return %c0_i32, %c0_i32_0 : i32, i32
  }
  func.func @transform_9(%arg0: i32) -> (i32, i32) {
    %c0_i32 = arith.constant 0 : i32
    %c0_i32_0 = arith.constant 0 : i32
    %c0_i32_1 = arith.constant 0 : i32
    return %c0_i32, %c0_i32_0 : i32, i32
  }
  func.func @transform_10(%arg0: i32) -> (i32, i32) {
    %c0_i32 = arith.constant 0 : i32
    %c0_i32_0 = arith.constant 0 : i32
    return %arg0, %c0_i32 : i32, i32
  }
}

</mosaic_0001>

<llo_original>
// kernel: tpu_custom_call.1
$region0: #{tpu_custom_call.1}
  #allocation0 [shape = 'u32[]', space=smem, size = 0x4, offset = 0x4, fixed_abs, tag = 'smem constant byte address 0x4 - core index']
  #allocation1 [shape = 'u32[72,128]{1,0:T(1,128)}', space=vmem, size = 0x9000, scoped, tag = 'internal scratch']
  %s0 = inlined_call_operand.hbm [shape: f32[16,16], index: 0, kind: input, shape index: {}]
  %s1 = inlined_call_operand.hbm [shape: f32[16,64], index: 1, kind: input, shape index: {}]
  %s2 = inlined_call_operand.hbm [shape: f32[16,64], index: 2, kind: input, shape index: {}]
  %s3 = inlined_call_operand.hbm [shape: f32[1,64], index: 3, kind: input, shape index: {}]
  %s4 = inlined_call_operand.hbm [shape: f32[64,256], index: 4, kind: input, shape index: {}]
  %s5 = inlined_call_operand.vmem [shape: f32[1,256], index: 5, kind: input, shape index: {}]
  %s6 = inlined_call_operand.hbm [shape: f32[128,256], index: 6, kind: input, shape index: {}]
  %s7 = inlined_call_operand.vmem [shape: f32[1,256], index: 7, kind: input, shape index: {}]
  %s8 = inlined_call_operand.hbm [shape: f32[128,128], index: 8, kind: input, shape index: {}]
  %s9 = inlined_call_operand.vmem [shape: f32[1,128], index: 9, kind: input, shape index: {}]
  %s10 = inlined_call_operand.hbm [shape: f32[16,128], index: 10, kind: output, shape index: {}]
  %s11 = sld [smem:[#allocation0]]
  $region78: #{tpu_custom_call.1} parent=0
    _
  %s13 = ssub.s32 1, %s11
  %s14 = scalar_select 0, %s13, %s11
  $region1: #{tpu_custom_call.1} parent=0
    #allocation2 [shape = 'u8[8192]{0}', space=vmem, size = 0x2000, scoped, tag = 'input window, operand 0, single buffered']
    #allocation3 [shape = 's32[1]{0}', space=sflag, size = 0x4, scoped, tag = 'scoped memory for tpu_custom_call.1']
    #allocation4 [shape = 's32[1]{0}', space=sflag, size = 0x4, scoped, tag = 'scoped memory for tpu_custom_call.1']
    #allocation5 [shape = 'u8[8192]{0}', space=vmem, size = 0x2000, scoped, tag = 'input window, operand 1, single buffered']
    #allocation6 [shape = 's32[1]{0}', space=sflag, size = 0x4, scoped, tag = 'scoped memory for tpu_custom_call.1']
    #allocation7 [shape = 'u8[8192]{0}', space=vmem, size = 0x2000, scoped, tag = 'input window, operand 2, single buffered']
    #allocation8 [shape = 'u8[512]{0}', space=vmem, size = 0x400, scoped, tag = 'input window, operand 3, single buffered']
    #allocation9 [shape = 's32[1]{0}', space=sflag, size = 0x4, scoped, tag = 'scoped memory for tpu_custom_call.1']
    #allocation10 [shape = 'u8[65536]{0}', space=vmem, size = 0x10000, scoped, tag = 'input window, operand 4, single buffered']
    #allocation11 [shape = 'u8[131072]{0}', space=vmem, size = 0x20000, scoped, tag = 'input window, operand 6, single buffered']
    #allocation12 [shape = 's32[1]{0}', space=sflag, size = 0x4, scoped, tag = 'scoped memory for tpu_custom_call.1']
    #allocation13 [shape = 'u8[65536]{0}', space=vmem, size = 0x10000, scoped, tag = 'input window, operand 8, single buffered']
    #allocation14 [shape = 'u8[8192]{0}', space=vmem, size = 0x2000, scoped, tag = 'output window, operand 0, single buffered']
    %15 = vsyncpa [#allocation3], 0
    %16 = vsyncpa [#allocation6], 0
    %17 = vsyncpa [#allocation9], 0
    %18 = vsyncpa [#allocation12], 0
    %19 = vsyncpa [#allocation4], 0
    // Predicated region
    $region2: #{tpu_custom_call.1} parent=1 // pred_check
      _
    $region3: #{tpu_custom_call.1} parent=1 // pred_check_branch
      %21 = sbr.rel (0) target = $region5
    $region4: #{tpu_custom_call.1} parent=1 // pred_region
      %23 = vsyncadd [#allocation3], 0
      %s24 = sshll.u32 %s0, 4
      %s25 = int_to_ptr.hbm [resolvable:$true] %s24
      %s26 = sshll.u32 [#allocation2], 4
      %s27 = int_to_ptr.vmem [resolvable:$true] %s26
      %32 = dma.hbm_to_vmem [thread:$0]  %s25, 256, %s27, [#allocation3], 128, 128, 8
    $region5: #{tpu_custom_call.1} parent=1 // pred_fallthru
      _
    // Predicated region
    $region6: #{tpu_custom_call.1} parent=1 // pred_check
      _
    $region7: #{tpu_custom_call.1} parent=1 // pred_check_branch
      %34 = sbr.rel (0) target = $region9
    $region8: #{tpu_custom_call.1} parent=1 // pred_region
      %36 = vsyncadd [#allocation6], 0
      %s37 = sshll.u32 %s1, 4
      %s38 = int_to_ptr.hbm [resolvable:$true] %s37
      %s39 = sshll.u32 [#allocation5], 4
      %s40 = int_to_ptr.vmem [resolvable:$true] %s39
      %45 = dma.hbm_to_vmem [thread:$0]  %s38, 256, %s40, [#allocation6], 128, 128, 8
    $region9: #{tpu_custom_call.1} parent=1 // pred_fallthru
      _
    // Predicated region
    $region10: #{tpu_custom_call.1} parent=1 // pred_check
      _
    $region11: #{tpu_custom_call.1} parent=1 // pred_check_branch
      %47 = sbr.rel (0) target = $region13
    $region12: #{tpu_custom_call.1} parent=1 // pred_region
      %49 = vsyncadd [#allocation6], 0
      %s50 = sshll.u32 %s2, 4
      %s51 = int_to_ptr.hbm [resolvable:$true] %s50
      %s52 = sshll.u32 [#allocation7], 4
      %s53 = int_to_ptr.vmem [resolvable:$true] %s52
      %58 = dma.hbm_to_vmem [thread:$0]  %s51, 256, %s53, [#allocation6], 128, 128, 8
    $region13: #{tpu_custom_call.1} parent=1 // pred_fallthru
      _
    // Predicated region
    $region14: #{tpu_custom_call.1} parent=1 // pred_check
      _
    $region15: #{tpu_custom_call.1} parent=1 // pred_check_branch
      %60 = sbr.rel (0) target = $region17
    $region16: #{tpu_custom_call.1} parent=1 // pred_region
      %62 = vsyncadd [#allocation9], 0
      %s64 = sshll.u32 %s3, 4
      %s65 = int_to_ptr.hbm [resolvable:$true] %s64
      %s66 = sshll.u32 [#allocation8], 4
      %s67 = int_to_ptr.vmem [resolvable:$true] %s66
      %69 = dma.hbm_to_vmem [thread:$0]  %s65, 16, %s67, [#allocation9]
    $region17: #{tpu_custom_call.1} parent=1 // pred_fallthru
      _
    // Predicated region
    $region18: #{tpu_custom_call.1} parent=1 // pred_check
      _
    $region19: #{tpu_custom_call.1} parent=1 // pred_check_branch
      %71 = sbr.rel (0) target = $region21
    $region20: #{tpu_custom_call.1} parent=1 // pred_region
      %73 = vsyncadd [#allocation9], 0
      %s74 = sshll.u32 %s4, 4
      %s75 = int_to_ptr.hbm [resolvable:$true] %s74
      %s76 = sshll.u32 [#allocation10], 4
      %s77 = int_to_ptr.vmem [resolvable:$true] %s76
      %82 = dma.hbm_to_vmem [thread:$0]  %s75, 2048, %s77, [#allocation9], 256, 256, 16
    $region21: #{tpu_custom_call.1} parent=1 // pred_fallthru
      _
    // Predicated region
    $region22: #{tpu_custom_call.1} parent=1 // pred_check
      _
    $region23: #{tpu_custom_call.1} parent=1 // pred_check_branch
      %84 = sbr.rel (0) target = $region25
    $region24: #{tpu_custom_call.1} parent=1 // pred_region
      _
    $region25: #{tpu_custom_call.1} parent=1 // pred_fallthru
      _
    // Predicated region
    $region26: #{tpu_custom_call.1} parent=1 // pred_check
      _
    $region27: #{tpu_custom_call.1} parent=1 // pred_check_branch
      %86 = sbr.rel (0) target = $region29
    $region28: #{tpu_custom_call.1} parent=1 // pred_region
      %88 = vsyncadd [#allocation12], 0
      %s89 = sshll.u32 %s6, 4
      %s90 = int_to_ptr.hbm [resolvable:$true] %s89
      %s91 = sshll.u32 [#allocation11], 4
      %s92 = int_to_ptr.vmem [resolvable:$true] %s91
      %97 = dma.hbm_to_vmem [thread:$0]  %s90, 4096, %s92, [#allocation12], 256, 256, 16
    $region29: #{tpu_custom_call.1} parent=1 // pred_fallthru
      _
    // Predicated region
    $region30: #{tpu_custom_call.1} parent=1 // pred_check
      _
    $region31: #{tpu_custom_call.1} parent=1 // pred_check_branch
      %99 = sbr.rel (0) target = $region33
    $region32: #{tpu_custom_call.1} parent=1 // pred_region
      _
    $region33: #{tpu_custom_call.1} parent=1 // pred_fallthru
      _
    // Predicated region
    $region34: #{tpu_custom_call.1} parent=1 // pred_check
      _
    $region35: #{tpu_custom_call.1} parent=1 // pred_check_branch
      %101 = sbr.rel (0) target = $region37
    $region36: #{tpu_custom_call.1} parent=1 // pred_region
      %103 = vsyncadd [#allocation12], 0
      %s104 = sshll.u32 %s8, 4
      %s105 = int_to_ptr.hbm [resolvable:$true] %s104
      %s106 = sshll.u32 [#allocation13], 4
      %s107 = int_to_ptr.vmem [resolvable:$true] %s106
      %112 = dma.hbm_to_vmem [thread:$0]  %s105, 2048, %s107, [#allocation12], 128, 128, 8
    $region37: #{tpu_custom_call.1} parent=1 // pred_fallthru
      _
    // Predicated region
    $region38: #{tpu_custom_call.1} parent=1 // pred_check
      _
    $region39: #{tpu_custom_call.1} parent=1 // pred_check_branch
      %114 = sbr.rel (0) target = $region41
    $region40: #{tpu_custom_call.1} parent=1 // pred_region
      _
    $region41: #{tpu_custom_call.1} parent=1 // pred_fallthru
      _
    // Predicated region
    $region42: #{tpu_custom_call.1} parent=1 // pred_check
      _
    $region43: #{tpu_custom_call.1} parent=1 // pred_check_branch
      %116 = sbr.rel (0) target = $region45
    $region44: #{tpu_custom_call.1} parent=1 // pred_region
      %118 = dma.done [#allocation3], 256
    $region45: #{tpu_custom_call.1} parent=1 // pred_fallthru
      _
    // Predicated region
    $region46: #{tpu_custom_call.1} parent=1 // pred_check
      _
    $region47: #{tpu_custom_call.1} parent=1 // pred_check_branch
      %120 = sbr.rel (0) target = $region49
    $region48: #{tpu_custom_call.1} parent=1 // pred_region
      %122 = dma.done [#allocation6], 256
    $region49: #{tpu_custom_call.1} parent=1 // pred_fallthru
      _
    // Predicated region
    $region50: #{tpu_custom_call.1} parent=1 // pred_check
      _
    $region51: #{tpu_custom_call.1} parent=1 // pred_check_branch
      %124 = sbr.rel (0) target = $region53
    $region52: #{tpu_custom_call.1} parent=1 // pred_region
      %126 = dma.done [#allocation6], 256
    $region53: #{tpu_custom_call.1} parent=1 // pred_fallthru
      _
    // Predicated region
    $region54: #{tpu_custom_call.1} parent=1 // pred_check
      _
    $region55: #{tpu_custom_call.1} parent=1 // pred_check_branch
      %128 = sbr.rel (0) target = $region57
    $region56: #{tpu_custom_call.1} parent=1 // pred_region
      %130 = dma.done [#allocation9], 16
    $region57: #{tpu_custom_call.1} parent=1 // pred_fallthru
      _
    // Predicated region
    $region58: #{tpu_custom_call.1} parent=1 // pred_check
      _
    $region59: #{tpu_custom_call.1} parent=1 // pred_check_branch
      %132 = sbr.rel (0) target = $region61
    $region60: #{tpu_custom_call.1} parent=1 // pred_region
      %134 = dma.done [#allocation9], 2048
    $region61: #{tpu_custom_call.1} parent=1 // pred_fallthru
      _
    // Predicated region
    $region62: #{tpu_custom_call.1} parent=1 // pred_check
      _
    $region63: #{tpu_custom_call.1} parent=1 // pred_check_branch
      %136 = sbr.rel (0) target = $region65
    $region64: #{tpu_custom_call.1} parent=1 // pred_region
      %138 = dma.done [#allocation12], 4096
    $region65: #{tpu_custom_call.1} parent=1 // pred_fallthru
      _
    // Predicated region
    $region66: #{tpu_custom_call.1} parent=1 // pred_check
      _
    $region67: #{tpu_custom_call.1} parent=1 // pred_check_branch
      %140 = sbr.rel (0) target = $region69
    $region68: #{tpu_custom_call.1} parent=1 // pred_region
      %142 = dma.done [#allocation12], 2048
    $region69: #{tpu_custom_call.1} parent=1 // pred_fallthru
      _
    %v143 = vld [vmem:[#allocation2] sm:$0xff]
    %v144 = vld [vmem:[#allocation2 + $0x8] sm:$0xff]
    %v145 = vld [vmem:[#allocation7] sm:$0xff]
    %v146 = vld [vmem:[#allocation7 + $0x8] sm:$0xff]
    %v147 = vld [vmem:[#allocation8] sm:$0x1]
    %v149 = vperm.slane %v147, 0
    %vm151 = vcmask 130048
    %v153 = vsel %vm151, %v143, 0
    %v156 = vsel %vm151, %v144, 0
    %158 = vmatpush.msra.mxu0 0.0
    %159 = vmatpush.msra.mxu0 0.0
    %160 = vmatpush.msra.mxu0 0.0
    %161 = vmatpush.msra.mxu0 0.0
    %162 = vmatpush.msra.mxu0 0.0
    %163 = vmatpush.msra.mxu0 0.0
    %164 = vmatpush.msra.mxu0 0.0
    %165 = vmatpush.msra.mxu0 0.0
    %166 = vmatpush.msra.mxu0 0.0
    %167 = vmatpush.msra.mxu0 0.0
    %168 = vmatpush.msra.mxu0 0.0
    %169 = vmatpush.msra.mxu0 0.0
    %170 = vmatpush.msra.mxu0 0.0
    %171 = vmatpush.msra.mxu0 0.0
    %172 = vmatpush.msra.mxu0 %v146
    %173 = vmatpush.msra.mxu0 %v145
    %174 = vmatmul.f32.gmra.mxu0 %v153
    %v175 = vpop.f32.mrf.mxu0
    %v176 = vadd.f32 %v149, %v175
    %177 = vmatmul.f32.gmra.mxu0 %v156
    %v178 = vpop.f32.mrf.mxu0
    %v179 = vadd.f32 %v149, %v178
    %180 = vdwg.mxu0
    %v181 = vmax.f32 %v176, 0.0
    %v182 = vmax.f32 %v179, 0.0
    %v183 = vld [vmem:[#allocation10] sm:$0xff]
    %v184 = vld [vmem:[#allocation10 + $0x8] sm:$0xff]
    %v185 = vld [vmem:[#allocation10 + $0x10] sm:$0xff]
    %v186 = vld [vmem:[#allocation10 + $0x18] sm:$0xff]
    %v187 = vld [vmem:[#allocation10 + $0x20] sm:$0xff]
    %v188 = vld [vmem:[#allocation10 + $0x28] sm:$0xff]
    %v189 = vld [vmem:[#allocation10 + $0x30] sm:$0xff]
    %v190 = vld [vmem:[#allocation10 + $0x38] sm:$0xff]
    %v191 = vld [vmem:[#allocation10 + $0x40] sm:$0xff]
    %v192 = vld [vmem:[#allocation10 + $0x48] sm:$0xff]
    %v193 = vld [vmem:[#allocation10 + $0x50] sm:$0xff]
    %v194 = vld [vmem:[#allocation10 + $0x58] sm:$0xff]
    %v195 = vld [vmem:[#allocation10 + $0x60] sm:$0xff]
    %v196 = vld [vmem:[#allocation10 + $0x68] sm:$0xff]
    %v197 = vld [vmem:[#allocation10 + $0x70] sm:$0xff]
    %v198 = vld [vmem:[#allocation10 + $0x78] sm:$0xff]
    %v199 = vld [vmem:[%s5] sm:$0x3]
    %v201 = vperm.slane %v199, 0
    %v202 = vperm.slane %v199, 1
    %vm205 = vcmask 523264
    %v207 = vsel %vm205, %v181, 0
    %v210 = vsel %vm205, %v182, 0
    %212 = vmatpush.msra.mxu0 0.0
    %213 = vmatpush.msra.mxu0 0.0
    %214 = vmatpush.msra.mxu0 0.0
    %215 = vmatpush.msra.mxu0 0.0
    %216 = vmatpush.msra.mxu0 0.0
    %217 = vmatpush.msra.mxu0 0.0
    %218 = vmatpush.msra.mxu0 0.0
    %219 = vmatpush.msra.mxu0 0.0
    %220 = vmatpush.msra.mxu0 %v197
    %221 = vmatpush.msra.mxu0 %v195
    %222 = vmatpush.msra.mxu0 %v193
    %223 = vmatpush.msra.mxu0 %v191
    %224 = vmatpush.msra.mxu0 %v189
    %225 = vmatpush.msra.mxu0 %v187
    %226 = vmatpush.msra.mxu0 %v185
    %227 = vmatpush.msra.mxu0 %v183
    %228 = vmatmul.f32.gmra.mxu0 %v207
    %v229 = vpop.f32.mrf.mxu0
    %v230 = vadd.f32 %v201, %v229
    %231 = vmatmul.f32.gmra.mxu0 %v210
    %v232 = vpop.f32.mrf.mxu0
    %v233 = vadd.f32 %v201, %v232
    %234 = vdwg.mxu0
    %235 = vmatpush.msra.mxu0 0.0
    %236 = vmatpush.msra.mxu0 0.0
    %237 = vmatpush.msra.mxu0 0.0
    %238 = vmatpush.msra.mxu0 0.0
    %239 = vmatpush.msra.mxu0 0.0
    %240 = vmatpush.msra.mxu0 0.0
    %241 = vmatpush.msra.mxu0 0.0
    %242 = vmatpush.msra.mxu0 0.0
    %243 = vmatpush.msra.mxu0 %v198
    %244 = vmatpush.msra.mxu0 %v196
    %245 = vmatpush.msra.mxu0 %v194
    %246 = vmatpush.msra.mxu0 %v192
    %247 = vmatpush.msra.mxu0 %v190
    %248 = vmatpush.msra.mxu0 %v188
    %249 = vmatpush.msra.mxu0 %v186
    %250 = vmatpush.msra.mxu0 %v184
    %251 = vmatmul.f32.gmra.mxu0 %v207
    %v252 = vpop.f32.mrf.mxu0
    %v253 = vadd.f32 %v202, %v252
    %254 = vmatmul.f32.gmra.mxu0 %v210
    %v255 = vpop.f32.mrf.mxu0
    %v256 = vadd.f32 %v202, %v255
    %257 = vdwg.mxu0
    %v258 = vmax.f32 %v253, 0.0
    %v259 = vmax.f32 %v256, 0.0
    %v260 = vand.u32 2147483647, %v253
    %v261 = vand.u32 2147483647, %v256
    %v262 = vsub.f32 0.0, %v260
    %v263 = vsub.f32 0.0, %v261
    %v264 = vmul.f32 %v262, 1.442695
    %v265 = vpow.pop %v264
    %v266 = vmul.f32 %v263, 1.442695
    %v267 = vpow.pop %v266
    %v268 = vadd.f32 %v265, 1.0
    %v269 = vlog2.pop %v268
    %v270 = vmul.f32 %v269, 0.6931472
    %v271 = vmul.f32 -0.5, %v265
    %v272 = vadd.f32 %v271, 1.0
    %v273 = vmul.f32 %v272, %v265
    %v274 = vand.u32 2147483647, %v265
    %vm275 = vcmp.lt.f32.partialorder %v274, 0.0004427343
    %v276 = vsel %vm275, %v273, %v270
    %v277 = vadd.f32 %v267, 1.0
    %v278 = vlog2.pop %v277
    %v279 = vmul.f32 %v278, 0.6931472
    %v280 = vmul.f32 -0.5, %v267
    %v281 = vadd.f32 %v280, 1.0
    %v282 = vmul.f32 %v281, %v267
    %v283 = vand.u32 2147483647, %v267
    %vm284 = vcmp.lt.f32.partialorder %v283, 0.0004427343
    %v285 = vsel %vm284, %v282, %v279
    %v286 = vadd.f32 %v258, %v276
    %v287 = vadd.f32 %v259, %v285
    %v288 = vld [vmem:[#allocation5] sm:$0xff]
    %v289 = vld [vmem:[#allocation5 + $0x8] sm:$0xff]
    %v290 = vsel %vm205, %v288, 0.0
    %v291 = vsel %vm205, %v289, 0.0
    %v292 = vmul.f32 %v290, %v286
    %v293 = vmul.f32 %v291, %v287
    %v294 = vadd.f32 %v230, %v292
    %v295 = vadd.f32 %v233, %v293
    %v296 = vld [vmem:[#allocation11] sm:$0xff]
    %v297 = vld [vmem:[#allocation11 + $0x8] sm:$0xff]
    %v298 = vld [vmem:[#allocation11 + $0x10] sm:$0xff]
    %v299 = vld [vmem:[#allocation11 + $0x18] sm:$0xff]
    %v300 = vld [vmem:[#allocation11 + $0x20] sm:$0xff]
    %v301 = vld [vmem:[#allocation11 + $0x28] sm:$0xff]
    %v302 = vld [vmem:[#allocation11 + $0x30] sm:$0xff]
    %v303 = vld [vmem:[#allocation11 + $0x38] sm:$0xff]
    %v304 = vld [vmem:[#allocation11 + $0x40] sm:$0xff]
    %v305 = vld [vmem:[#allocation11 + $0x48] sm:$0xff]
    %v306 = vld [vmem:[#allocation11 + $0x50] sm:$0xff]
    %v307 = vld [vmem:[#allocation11 + $0x58] sm:$0xff]
    %v308 = vld [vmem:[#allocation11 + $0x60] sm:$0xff]
    %v309 = vld [vmem:[#allocation11 + $0x68] sm:$0xff]
    %v310 = vld [vmem:[#allocation11 + $0x70] sm:$0xff]
    %v311 = vld [vmem:[#allocation11 + $0x78] sm:$0xff]
    %v312 = vld [vmem:[#allocation11 + $0x80] sm:$0xff]
    %v313 = vld [vmem:[#allocation11 + $0x88] sm:$0xff]
    %v314 = vld [vmem:[#allocation11 + $0x90] sm:$0xff]
    %v315 = vld [vmem:[#allocation11 + $0x98] sm:$0xff]
    %v316 = vld [vmem:[#allocation11 + $0xa0] sm:$0xff]
    %v317 = vld [vmem:[#allocation11 + $0xa8] sm:$0xff]
    %v318 = vld [vmem:[#allocation11 + $0xb0] sm:$0xff]
    %v319 = vld [vmem:[#allocation11 + $0xb8] sm:$0xff]
    %v320 = vld [vmem:[#allocation11 + $0xc0] sm:$0xff]
    %v321 = vld [vmem:[#allocation11 + $0xc8] sm:$0xff]
    %v322 = vld [vmem:[#allocation11 + $0xd0] sm:$0xff]
    %v323 = vld [vmem:[#allocation11 + $0xd8] sm:$0xff]
    %v324 = vld [vmem:[#allocation11 + $0xe0] sm:$0xff]
    %v325 = vld [vmem:[#allocation11 + $0xe8] sm:$0xff]
    %v326 = vld [vmem:[#allocation11 + $0xf0] sm:$0xff]
    %v327 = vld [vmem:[#allocation11 + $0xf8] sm:$0xff]
    %v328 = vld [vmem:[%s7] sm:$0x3]
    %v330 = vperm.slane %v328, 0
    %v331 = vperm.slane %v328, 1
    %334 = vmatpush.msra.mxu0 %v326
    %335 = vmatpush.msra.mxu0 %v324
    %336 = vmatpush.msra.mxu0 %v322
    %337 = vmatpush.msra.mxu0 %v320
    %338 = vmatpush.msra.mxu0 %v318
    %339 = vmatpush.msra.mxu0 %v316
    %340 = vmatpush.msra.mxu0 %v314
    %341 = vmatpush.msra.mxu0 %v312
    %342 = vmatpush.msra.mxu0 %v310
    %343 = vmatpush.msra.mxu0 %v308
    %344 = vmatpush.msra.mxu0 %v306
    %345 = vmatpush.msra.mxu0 %v304
    %346 = vmatpush.msra.mxu0 %v302
    %347 = vmatpush.msra.mxu0 %v300
    %348 = vmatpush.msra.mxu0 %v298
    %349 = vmatpush.msra.mxu0 %v296
    %350 = vmatmul.f32.gmra.mxu0 %v294
    %v351 = vpop.f32.mrf.mxu0
    %v352 = vadd.f32 %v330, %v351
    %353 = vmatmul.f32.gmra.mxu0 %v295
    %v354 = vpop.f32.mrf.mxu0
    %v355 = vadd.f32 %v330, %v354
    %356 = vdwg.mxu0
    %357 = vmatpush.msra.mxu0 %v327
    %358 = vmatpush.msra.mxu0 %v325
    %359 = vmatpush.msra.mxu0 %v323
    %360 = vmatpush.msra.mxu0 %v321
    %361 = vmatpush.msra.mxu0 %v319
    %362 = vmatpush.msra.mxu0 %v317
    %363 = vmatpush.msra.mxu0 %v315
    %364 = vmatpush.msra.mxu0 %v313
    %365 = vmatpush.msra.mxu0 %v311
    %366 = vmatpush.msra.mxu0 %v309
    %367 = vmatpush.msra.mxu0 %v307
    %368 = vmatpush.msra.mxu0 %v305
    %369 = vmatpush.msra.mxu0 %v303
    %370 = vmatpush.msra.mxu0 %v301
    %371 = vmatpush.msra.mxu0 %v299
    %372 = vmatpush.msra.mxu0 %v297
    %373 = vmatmul.f32.gmra.mxu0 %v294
    %v374 = vpop.f32.mrf.mxu0
    %v375 = vadd.f32 %v331, %v374
    %376 = vmatmul.f32.gmra.mxu0 %v295
    %v377 = vpop.f32.mrf.mxu0
    %v378 = vadd.f32 %v331, %v377
    %379 = vdwg.mxu0
    %v380 = vmax.f32 %v352, 0.0
    %v381 = vmax.f32 %v355, 0.0
    %v382 = vld [vmem:[#allocation13] sm:$0xff]
    %v383 = vld [vmem:[#allocation13 + $0x8] sm:$0xff]
    %v384 = vld [vmem:[#allocation13 + $0x10] sm:$0xff]
    %v385 = vld [vmem:[#allocation13 + $0x18] sm:$0xff]
    %v386 = vld [vmem:[#allocation13 + $0x20] sm:$0xff]
    %v387 = vld [vmem:[#allocation13 + $0x28] sm:$0xff]
    %v388 = vld [vmem:[#allocation13 + $0x30] sm:$0xff]
    %v389 = vld [vmem:[#allocation13 + $0x38] sm:$0xff]
    %v390 = vld [vmem:[#allocation13 + $0x40] sm:$0xff]
    %v391 = vld [vmem:[#allocation13 + $0x48] sm:$0xff]
    %v392 = vld [vmem:[#allocation13 + $0x50] sm:$0xff]
    %v393 = vld [vmem:[#allocation13 + $0x58] sm:$0xff]
    %v394 = vld [vmem:[#allocation13 + $0x60] sm:$0xff]
    %v395 = vld [vmem:[#allocation13 + $0x68] sm:$0xff]
    %v396 = vld [vmem:[#allocation13 + $0x70] sm:$0xff]
    %v397 = vld [vmem:[#allocation13 + $0x78] sm:$0xff]
    %v398 = vld [vmem:[%s9] sm:$0x1]
    %v400 = vperm.slane %v398, 0
    %402 = vmatpush.msra.mxu0 %v397
    %403 = vmatpush.msra.mxu0 %v396
    %404 = vmatpush.msra.mxu0 %v395
    %405 = vmatpush.msra.mxu0 %v394
    %406 = vmatpush.msra.mxu0 %v393
    %407 = vmatpush.msra.mxu0 %v392
    %408 = vmatpush.msra.mxu0 %v391
    %409 = vmatpush.msra.mxu0 %v390
    %410 = vmatpush.msra.mxu0 %v389
    %411 = vmatpush.msra.mxu0 %v388
    %412 = vmatpush.msra.mxu0 %v387
    %413 = vmatpush.msra.mxu0 %v386
    %414 = vmatpush.msra.mxu0 %v385
    %415 = vmatpush.msra.mxu0 %v384
    %416 = vmatpush.msra.mxu0 %v383
    %417 = vmatpush.msra.mxu0 %v382
    %418 = vmatmul.f32.gmra.mxu0 %v380
    %v419 = vpop.f32.mrf.mxu0
    %v420 = vadd.f32 %v400, %v419
    %421 = vmatmul.f32.gmra.mxu0 %v381
    %v422 = vpop.f32.mrf.mxu0
    %v423 = vadd.f32 %v400, %v422
    %424 = vdwg.mxu0
    %v425 = vadd.f32 %v294, %v375
    %v426 = vadd.f32 %v295, %v378
    %v427 = vadd.f32 %v425, %v420
    %v428 = vadd.f32 %v426, %v423
    %429 = vst [vmem:[#allocation14] sm:$0xff] %v427
    %430 = vst [vmem:[#allocation14 + $0x8] sm:$0xff] %v428
    // Predicated region
    $region70: #{tpu_custom_call.1} parent=1 // pred_check
      _
    $region71: #{tpu_custom_call.1} parent=1 // pred_check_branch
      %432 = sbr.rel (0) target = $region73
    $region72: #{tpu_custom_call.1} parent=1 // pred_region
      %434 = vsyncadd [#allocation4], 0
      %s435 = sshll.u32 [#allocation14], 4
      %s436 = int_to_ptr.vmem [resolvable:$true] %s435
      %s437 = sshll.u32 %s10, 4
      %s438 = int_to_ptr.hbm [resolvable:$true] %s437
      %443 = dma.vmem_to_hbm [thread:$0]  %s436, 256, %s438, [#allocation4], 128, 128, 8
    $region73: #{tpu_custom_call.1} parent=1 // pred_fallthru
      _
    // Predicated region
    $region74: #{tpu_custom_call.1} parent=1 // pred_check
      _
    $region75: #{tpu_custom_call.1} parent=1 // pred_check_branch
      %445 = sbr.rel (0) target = $region77
    $region76: #{tpu_custom_call.1} parent=1 // pred_region
      %447 = dma.done [#allocation4], 256
    $region77: #{tpu_custom_call.1} parent=1 // pred_fallthru
      _
    %448 = vsyncpa [#allocation3], 1
    %449 = vsyncpa [#allocation6], 1
    %450 = vsyncpa [#allocation9], 1
    %451 = vsyncpa [#allocation12], 1
    %452 = vsyncpa [#allocation4], 1

</llo_original>
